<compile_context>
chip_gen: v6e
topology: v6e:2x2x1
jax: 0.10.0
libtpu: 0.0.40
codegen_flags: <defaults>
</compile_context>

<pallas_src>
import functools

import jax
import jax.numpy as jnp
from jax import lax
from jax.experimental import pallas as pl
from jax.experimental.pallas import tpu as pltpu

LOG_STD_LO = -10.0
LOG_STD_HI = 2.0

_LANE = 128
_SUBLANE = 8
_DEFAULT_BATCH_TILE = 256


def _round_up(n, m):
    return ((n + m - 1) // m) * m


# ----------------------------------------------------------------------------
# Kernel
# ----------------------------------------------------------------------------
def _actor_kernel(x_ref, w1_ref, w2h_ref, b_ref, out_ref, *, hp, nb, nc):
    """Fused 2-layer MLP + three heads.

    x_ref   : (TB, S)  f32      input rows for this grid step
    w1_ref  : (S, hp)  bf16     fc1 weight, hidden padded to 128 lanes
    w2h_ref : (hp, hp+outp) bf16  [ fc2 | binary|mean|log_std heads ] packed
    b_ref   : (8, P)   f32      row0=b1, row1=b2, row2=packed head bias
    out_ref : (TB, outp) f32    [ sigmoid(binary) | mean | std | zero pad ]
    """
    outp = out_ref.shape[-1]
    n_out = nb + 2 * nc
    wdt = w1_ref.dtype

    x = x_ref[...].astype(wdt)

    # fc1 -> ReLU   (padded hidden lanes have zero weight & bias -> stay 0)
    h1 = jnp.dot(x, w1_ref[...], preferred_element_type=jnp.float32)
    h1 = jnp.maximum(h1 + b_ref[0:1, :hp], 0.0).astype(wdt)

    # fc2 -> ReLU   (left slab of packed buffer, lane-aligned static slice)
    h2 = jnp.dot(h1, w2h_ref[:, :hp], preferred_element_type=jnp.float32)
    h2 = jnp.maximum(h2 + b_ref[1:2, :hp], 0.0).astype(wdt)

    # single fused head matmul: columns = [binary | mean | log_std | pad]
    heads = jnp.dot(h2, w2h_ref[:, hp:], preferred_element_type=jnp.float32)
    heads = heads + b_ref[2:3, :outp]

    # Per-segment activation selected with lane-index masks so the store is a
    # single lane-dense, unmasked slab write.  sigmoid/tanh/exp run on the EUP
    # slot (cheap at outp == 128); the selects are cheap VPU ops.
    col = lax.broadcasted_iota(jnp.int32, heads.shape, 1)
    probs = jax.nn.sigmoid(heads)
    log_std = LOG_STD_LO + jnp.tanh(heads) * ((LOG_STD_HI - LOG_STD_LO) * 0.5)
    std = jnp.exp(log_std)

    out = jnp.where(col < nb, probs, jnp.where(col < nb + nc, heads, std))
    out_ref[...] = jnp.where(col < n_out, out, 0.0)


# ----------------------------------------------------------------------------
# Parameter packing (one-time) and forward wrapper
# ----------------------------------------------------------------------------
def pack_params(params, weight_dtype=jnp.bfloat16):
    """Pad/concatenate the raw per-layer params into the kernel's layout."""
    w1 = params["w1"]
    w2 = params["w2"]
    wb, wm, ws = params["wb"], params["wm"], params["ws"]
    b1 = params["b1"].reshape(-1)
    b2 = params["b2"].reshape(-1)
    bb = params["bb"].reshape(-1)
    bm = params["bm"].reshape(-1)
    bs = params["bs"].reshape(-1)

    state_dim, hidden = w1.shape
    nb, nc = wb.shape[1], wm.shape[1]
    hp = _round_up(hidden, _LANE)
    out = nb + 2 * nc
    outp = _round_up(out, _LANE)
    p = max(hp, outp)

    # fc1 weight, hidden (lane) dim zero-padded to 128 multiple.
    w1p = jnp.zeros((state_dim, hp), jnp.float32).at[:, :hidden].set(w1)

    # fc2 weight and fused head weight packed side-by-side: (hp, hp + outp).
    w2p = jnp.zeros((hp, hp), jnp.float32).at[:hidden, :hidden].set(w2)
    wh = jnp.concatenate([wb, wm, ws], axis=1)                   # (hidden, out)
    whp = jnp.zeros((hp, outp), jnp.float32).at[:hidden, :out].set(wh)
    w2h = jnp.concatenate([w2p, whp], axis=1)                    # (hp, hp+outp)

    # All biases in one (8, P) f32 buffer (rows 3..7 are padding).
    bh = jnp.concatenate([bb, bm, bs], axis=0)                   # (out,)
    bias = jnp.zeros((_SUBLANE, p), jnp.float32)
    bias = bias.at[0, :hidden].set(b1)
    bias = bias.at[1, :hidden].set(b2)
    bias = bias.at[2, :out].set(bh)

    meta = dict(state_dim=state_dim, hidden=hidden, nb=nb, nc=nc,
                hp=hp, out=out, outp=outp)
    return dict(w1=w1p.astype(weight_dtype), w2h=w2h.astype(weight_dtype),
                bias=bias, meta=meta)


def _choose_batch_tile(b, batch_tile):
    """Always tile the batch; never a single giant block."""
    if b <= _LANE:
        return _round_up(b, _SUBLANE)          # one small grid step
    # >= 2 grid steps so v7x can split across its two TensorCores, but never
    # larger than batch_tile (keeps per-step VMEM bounded, ~85% HBM roofline).
    half = _round_up(pl.cdiv(b, 2), _LANE)
    return min(batch_tile, half)


def mixed_policy_actor_forward(x, packed, *, batch_tile=_DEFAULT_BATCH_TILE):
    """Run the fused actor kernel.

    x: (B, state_dim) float32, packed: output of pack_params().
    Returns (binary_probs, mean, std).
    """
    meta = packed["meta"]
    s_dim = meta["state_dim"]
    hp, outp = meta["hp"], meta["outp"]
    nb, nc = meta["nb"], meta["nc"]

    x = x.astype(jnp.float32)
    b = x.shape[0]
    tb = _choose_batch_tile(b, batch_tile)
    num_blocks = pl.cdiv(b, tb)
    bp = num_blocks * tb
    if bp != b:
        x = jnp.pad(x, ((0, bp - b), (0, 0)))
    grid = (num_blocks,)

    w_itemsize = jnp.dtype(packed["w1"].dtype).itemsize
    wbytes = (packed["w1"].size * w_itemsize
              + packed["w2h"].size * w_itemsize
              + packed["bias"].size * 4)
    cost = pl.CostEstimate(
        flops=2 * bp * (s_dim * hp + hp * hp + hp * outp),
        transcendentals=3 * bp * outp,
        bytes_accessed=int(4 * bp * s_dim + wbytes + 4 * bp * outp),
    )

    # Explicit scoped-VMEM budget: single-buffered weights + a few streamed
    # x/out tile buffers + slack for activations.
    tile_bytes = tb * s_dim * 4 + tb * outp * 4
    vmem_limit = int(min(112 << 20,
                         max(24 << 20, 2 * wbytes + 6 * tile_bytes + (4 << 20))))

    kernel = functools.partial(_actor_kernel, hp=hp, nb=nb, nc=nc)

    def make_in_specs(use_pipeline_mode):
        if use_pipeline_mode:
            return [
                # streamed input tile: deeper buffering hides x prefetch
                pl.BlockSpec((tb, s_dim), lambda i: (i, 0),
                             pipeline_mode=pl.Buffered(3)),
                # resident weights/bias: constant index_map -> single buffer
                pl.BlockSpec(packed["w1"].shape, lambda i: (0, 0),
                             pipeline_mode=pl.Buffered(1)),
                pl.BlockSpec(packed["w2h"].shape, lambda i: (0, 0),
                             pipeline_mode=pl.Buffered(1)),
                pl.BlockSpec(packed["bias"].shape, lambda i: (0, 0),
                             pipeline_mode=pl.Buffered(1)),
            ]
        return [
            pl.BlockSpec((tb, s_dim), lambda i: (i, 0)),
            pl.BlockSpec(packed["w1"].shape, lambda i: (0, 0)),
            pl.BlockSpec(packed["w2h"].shape, lambda i: (0, 0)),
            pl.BlockSpec(packed["bias"].shape, lambda i: (0, 0)),
        ]

    def run(use_pipeline_mode):
        return pl.pallas_call(
            kernel,
            out_shape=jax.ShapeDtypeStruct((bp, outp), jnp.float32),
            grid=grid,
            in_specs=make_in_specs(use_pipeline_mode),
            out_specs=pl.BlockSpec((tb, outp), lambda i: (i, 0)),
            compiler_params=pltpu.CompilerParams(
                dimension_semantics=("parallel",),
                vmem_limit_bytes=vmem_limit),
            cost_estimate=cost,
        )(x, packed["w1"], packed["w2h"], packed["bias"])

    try:
        out = run(True)
    except Exception:
        # pipeline_mode / Buffered(1) not supported on this build -> default
        # double buffering (correctness identical, slightly more VMEM).
        out = run(False)

    probs = out[:b, :nb]
    mean = out[:b, nb:nb + nc]
    std = out[:b, nb + nc:nb + 2 * nc]
    return probs, mean, std


# ----------------------------------------------------------------------------
# Init (matches the PyTorch module's weight_init_) and plain-JAX references
# ----------------------------------------------------------------------------
def _xavier_uniform(key, fan_in, fan_out):
    bound = jnp.sqrt(6.0 / (fan_in + fan_out))
    return jax.random.uniform(key, (fan_in, fan_out), jnp.float32, -bound, bound)


def init_params(key, state_dim, hidden_dim, num_binary, num_cont):
    ks = jax.random.split(key, 5)
    return {
        "w1": _xavier_uniform(ks[0], state_dim, hidden_dim),
        "b1": jnp.full((1, hidden_dim), 0.01, jnp.float32),
        "w2": _xavier_uniform(ks[1], hidden_dim, hidden_dim),
        "b2": jnp.full((1, hidden_dim), 0.01, jnp.float32),
        "wb": _xavier_uniform(ks[2], hidden_dim, num_binary),
        "bb": jnp.full((1, num_binary), 0.01, jnp.float32),
        "wm": _xavier_uniform(ks[3], hidden_dim, num_cont),
        "bm": jnp.full((1, num_cont), 0.01, jnp.float32),
        "ws": _xavier_uniform(ks[4], hidden_dim, num_cont),
        "bs": jnp.full((1, num_cont), 0.01, jnp.float32),
    }


def _reference_f32(x, p):
    """Exact float32 PyTorch-module semantics."""
    h1 = jnp.maximum(x @ p["w1"] + p["b1"], 0.0)
    h2 = jnp.maximum(h1 @ p["w2"] + p["b2"], 0.0)
    probs = jax.nn.sigmoid(h2 @ p["wb"] + p["bb"])
    mean = h2 @ p["wm"] + p["bm"]
    # NOTE: faithfully matches the PyTorch code's squash
    # (lo + tanh*(hi-lo)/2), even though that maps to [-16, -4].
    ls = jnp.tanh(h2 @ p["ws"] + p["bs"])
    ls = LOG_STD_LO + ls * (LOG_STD_HI - LOG_STD_LO) / 2.0
    return probs, mean, jnp.exp(ls)


def _reference_quantized(x, p, weight_dtype=jnp.bfloat16):
    """Same math as the kernel (bf16 weights/activations, f32 accumulation)."""
    f32 = jnp.float32
    q = lambda a: a.astype(weight_dtype)
    h1 = jnp.dot(q(x), q(p["w1"]), preferred_element_type=f32) + p["b1"]
    h1 = q(jnp.maximum(h1, 0.0))
    h2 = jnp.dot(h1, q(p["w2"]), preferred_element_type=f32) + p["b2"]
    h2 = q(jnp.maximum(h2, 0.0))
    probs = jax.nn.sigmoid(
        jnp.dot(h2, q(p["wb"]), preferred_element_type=f32) + p["bb"])
    mean = jnp.dot(h2, q(p["wm"]), preferred_element_type=f32) + p["bm"]
    ls = jnp.tanh(jnp.dot(h2, q(p["ws"]), preferred_element_type=f32) + p["bs"])
    ls = LOG_STD_LO + ls * (LOG_STD_HI - LOG_STD_LO) / 2.0
    return probs, mean, jnp.exp(ls)


if __name__ == "__main__":
    key = jax.random.PRNGKey(0)
    k_p1, k_x1, k_p2, k_x2 = jax.random.split(key, 4)

    # --- small test (module scaled down) -------------------------------------
    params = init_params(k_p1, state_dim=16, hidden_dim=32,
                         num_binary=2, num_cont=2)
    packed = pack_params(params)
    x = jax.random.normal(k_x1, (2, 16), jnp.float32)

    probs, mean, std = mixed_policy_actor_forward(x, packed)
    jax.block_until_ready((probs, mean, std))
    assert probs.shape == (2, 2) and mean.shape == (2, 2) and std.shape == (2, 2)

    rq = _reference_quantized(x, params)
    for got, want in zip((probs, mean, std), rq):
        assert jnp.allclose(got, want, atol=1e-3, rtol=1e-3)
    rf = _reference_f32(x, params)
    for got, want in zip((probs, mean, std), rf):
        assert jnp.allclose(got, want, atol=1e-1, rtol=1e-1)

    # --- larger test: exercises batch tiling (grid > 1) and odd head sizes ---
    params2 = init_params(k_p2, state_dim=24, hidden_dim=256,
                          num_binary=3, num_cont=5)
    packed2 = pack_params(params2)
    x2 = jax.random.normal(k_x2, (300, 24), jnp.float32)

    p2, m2, s2 = mixed_policy_actor_forward(x2, packed2)
    jax.block_until_ready((p2, m2, s2))
    assert p2.shape == (300, 3) and m2.shape == (300, 5) and s2.shape == (300, 5)

    rq2 = _reference_quantized(x2, params2)
    for got, want in zip((p2, m2, s2), rq2):
        assert jnp.allclose(got, want, atol=1e-3, rtol=1e-3)

    print("KERNEL_OK")
</pallas_src>

<mosaic_0001>
module attributes {stable_mosaic.version = 11 : i64} {
  func.func @_actor_kernel(%arg0: i32, %arg1: memref<8x16xf32, #tpu.memory_space<vmem>>, %arg2: memref<16x128xbf16, #tpu.memory_space<vmem>>, %arg3: memref<128x256xbf16, #tpu.memory_space<vmem>>, %arg4: memref<8x128xf32, #tpu.memory_space<vmem>>, %arg5: memref<8x128xf32, #tpu.memory_space<vmem>>) attributes {dimension_semantics = [#tpu.dimension_semantics<parallel>], iteration_bounds = array<i64: 1>, scalar_prefetch = 0 : i64, scratch_operands = 0 : i64, tpu.core_type = #tpu.core_type<tc>, window_params = [{transform_indices = @transform_0, window_bounds = array<i64: 8, 16>}, {pipeline_mode = #tpu.pipeline_mode<synchronous>, transform_indices = @transform_1, window_bounds = array<i64: 16, 128>}, {pipeline_mode = #tpu.pipeline_mode<synchronous>, transform_indices = @transform_2, window_bounds = array<i64: 128, 256>}, {pipeline_mode = #tpu.pipeline_mode<synchronous>, transform_indices = @transform_3, window_bounds = array<i64: 8, 128>}, {transform_indices = @transform_4, window_bounds = array<i64: 8, 128>}]} {
    %c0 = arith.constant 0 : index
    %c0_0 = arith.constant 0 : index
    %0 = vector.load %arg1[%c0, %c0_0] : memref<8x16xf32, #tpu.memory_space<vmem>>, vector<8x16xf32>
    %1 = arith.truncf %0 : vector<8x16xf32> to vector<8x16xbf16>
    %c0_1 = arith.constant 0 : index
    %c0_2 = arith.constant 0 : index
    %2 = vector.load %arg2[%c0_1, %c0_2] : memref<16x128xbf16, #tpu.memory_space<vmem>>, vector<16x128xbf16>
    %cst = arith.constant dense<0.000000e+00> : vector<8x128xf32>
    %3 = tpu.matmul %1, %2, %cst {dimension_numbers = #tpu.dot_dimension_numbers<[1], [0], [0], [1], [0, 0, 1, 1], [], []>} : vector<8x16xbf16>, vector<16x128xbf16>, vector<8x128xf32> -> vector<8x128xf32>
    %c0_3 = arith.constant 0 : index
    %c0_4 = arith.constant 0 : index
    %4 = vector.load %arg4[%c0_3, %c0_4] : memref<8x128xf32, #tpu.memory_space<vmem>>, vector<1x128xf32>
    %5 = vector.broadcast %4 : vector<1x128xf32> to vector<8x128xf32>
    %6 = arith.addf %3, %5 : vector<8x128xf32>
    %cst_5 = arith.constant 0.000000e+00 : f32
    %7 = vector.broadcast %cst_5 : f32 to vector<8x128xf32>
    %8 = arith.maximumf %6, %7 : vector<8x128xf32>
    %9 = arith.truncf %8 : vector<8x128xf32> to vector<8x128xbf16>
    %c0_6 = arith.constant 0 : index
    %c0_7 = arith.constant 0 : index
    %10 = vector.load %arg3[%c0_6, %c0_7] : memref<128x256xbf16, #tpu.memory_space<vmem>>, vector<128x128xbf16>
    %cst_8 = arith.constant dense<0.000000e+00> : vector<8x128xf32>
    %11 = tpu.matmul %9, %10, %cst_8 {dimension_numbers = #tpu.dot_dimension_numbers<[1], [0], [0], [1], [0, 0, 1, 1], [], []>} : vector<8x128xbf16>, vector<128x128xbf16>, vector<8x128xf32> -> vector<8x128xf32>
    %c1 = arith.constant 1 : index
    %c0_9 = arith.constant 0 : index
    %12 = vector.load %arg4[%c1, %c0_9] : memref<8x128xf32, #tpu.memory_space<vmem>>, vector<1x128xf32>
    %13 = vector.broadcast %12 : vector<1x128xf32> to vector<8x128xf32>
    %14 = arith.addf %11, %13 : vector<8x128xf32>
    %cst_10 = arith.constant 0.000000e+00 : f32
    %15 = vector.broadcast %cst_10 : f32 to vector<8x128xf32>
    %16 = arith.maximumf %14, %15 : vector<8x128xf32>
    %17 = arith.truncf %16 : vector<8x128xf32> to vector<8x128xbf16>
    %c0_11 = arith.constant 0 : index
    %c128 = arith.constant 128 : index
    %18 = vector.load %arg3[%c0_11, %c128] : memref<128x256xbf16, #tpu.memory_space<vmem>>, vector<128x128xbf16>
    %cst_12 = arith.constant dense<0.000000e+00> : vector<8x128xf32>
    %19 = tpu.matmul %17, %18, %cst_12 {dimension_numbers = #tpu.dot_dimension_numbers<[1], [0], [0], [1], [0, 0, 1, 1], [], []>} : vector<8x128xbf16>, vector<128x128xbf16>, vector<8x128xf32> -> vector<8x128xf32>
    %c2 = arith.constant 2 : index
    %c0_13 = arith.constant 0 : index
    %20 = vector.load %arg4[%c2, %c0_13] : memref<8x128xf32, #tpu.memory_space<vmem>>, vector<1x128xf32>
    %21 = vector.broadcast %20 : vector<1x128xf32> to vector<8x128xf32>
    %22 = arith.addf %19, %21 : vector<8x128xf32>
    %23 = tpu.iota {dimensions = array<i32: 1>} : vector<8x128xi32>
    %24 = arith.negf %22 : vector<8x128xf32>
    %25 = math.exp %24 : vector<8x128xf32>
    %cst_14 = arith.constant 1.000000e+00 : f32
    %26 = vector.broadcast %cst_14 : f32 to vector<8x128xf32>
    %27 = arith.addf %26, %25 : vector<8x128xf32>
    %28 = arith.divf %26, %27 : vector<8x128xf32>
    %29 = math.tanh %22 : vector<8x128xf32>
    %cst_15 = arith.constant 6.000000e+00 : f32
    %30 = vector.broadcast %cst_15 : f32 to vector<8x128xf32>
    %31 = arith.mulf %29, %30 : vector<8x128xf32>
    %cst_16 = arith.constant -1.000000e+01 : f32
    %32 = vector.broadcast %cst_16 : f32 to vector<8x128xf32>
    %33 = arith.addf %32, %31 : vector<8x128xf32>
    %34 = math.exp %33 : vector<8x128xf32>
    %c2_i32 = arith.constant 2 : i32
    %35 = vector.broadcast %c2_i32 : i32 to vector<8x128xi32>
    %36 = arith.cmpi slt, %23, %35 : vector<8x128xi32>
    %c4_i32 = arith.constant 4 : i32
    %37 = vector.broadcast %c4_i32 : i32 to vector<8x128xi32>
    %38 = arith.cmpi slt, %23, %37 : vector<8x128xi32>
    %39 = arith.select %38, %22, %34 : vector<8x128xi1>, vector<8x128xf32>
    %40 = arith.select %36, %28, %39 : vector<8x128xi1>, vector<8x128xf32>
    %c6_i32 = arith.constant 6 : i32
    %41 = vector.broadcast %c6_i32 : i32 to vector<8x128xi32>
    %42 = arith.cmpi slt, %23, %41 : vector<8x128xi32>
    %cst_17 = arith.constant 0.000000e+00 : f32
    %43 = vector.broadcast %cst_17 : f32 to vector<8x128xf32>
    %44 = arith.select %42, %40, %43 : vector<8x128xi1>, vector<8x128xf32>
    %c0_18 = arith.constant 0 : index
    %c0_19 = arith.constant 0 : index
    %45 = vector.load %arg5[%c0_18, %c0_19] : memref<8x128xf32, #tpu.memory_space<vmem>>, vector<8x128xf32>
    tpu.vector_store %arg5[%c0_18, %c0_19], %44 {strides = array<i32>} : memref<8x128xf32, #tpu.memory_space<vmem>>, vector<8x128xf32>,
    return
  }
  func.func @transform_0(%arg0: i32) -> (i32, i32) {
    %c0_i32 = arith.constant 0 : i32
    %c0_i32_0 = arith.constant 0 : i32
    return %arg0, %c0_i32 : i32, i32
  }
  func.func @transform_1(%arg0: i32) -> (i32, i32) {
    %c0_i32 = arith.constant 0 : i32
    %c0_i32_0 = arith.constant 0 : i32
    %c0_i32_1 = arith.constant 0 : i32
    return %c0_i32, %c0_i32_0 : i32, i32
  }
  func.func @transform_2(%arg0: i32) -> (i32, i32) {
    %c0_i32 = arith.constant 0 : i32
    %c0_i32_0 = arith.constant 0 : i32
    %c0_i32_1 = arith.constant 0 : i32
    return %c0_i32, %c0_i32_0 : i32, i32
  }
  func.func @transform_3(%arg0: i32) -> (i32, i32) {
    %c0_i32 = arith.constant 0 : i32
    %c0_i32_0 = arith.constant 0 : i32
    %c0_i32_1 = arith.constant 0 : i32
    return %c0_i32, %c0_i32_0 : i32, i32
  }
  func.func @transform_4(%arg0: i32) -> (i32, i32) {
    %c0_i32 = arith.constant 0 : i32
    %c0_i32_0 = arith.constant 0 : i32
    return %arg0, %c0_i32 : i32, i32
  }
}

</mosaic_0001>

<llo_original>
// kernel: tpu_custom_call.1
$region0: #{tpu_custom_call.1}
  #allocation0 [shape = 'u32[]', space=smem, size = 0x4, offset = 0x4, fixed_abs, tag = 'smem constant byte address 0x4 - core index']
  #allocation1 [shape = 'u32[144,128]{1,0:T(1,128)}', space=vmem, size = 0x12000, scoped, tag = 'internal scratch']
  %s0 = inlined_call_operand.hbm [shape: f32[8,16], index: 0, kind: input, shape index: {}]
  %s1 = inlined_call_operand.hbm [shape: bf16[16,128], index: 1, kind: input, shape index: {}]
  %s2 = inlined_call_operand.hbm [shape: bf16[128,256], index: 2, kind: input, shape index: {}]
  %s3 = inlined_call_operand.hbm [shape: f32[8,128], index: 3, kind: input, shape index: {}]
  %s4 = inlined_call_operand.hbm [shape: f32[8,128], index: 4, kind: output, shape index: {}]
  %s5 = sld [smem:[#allocation0]]
  $region42: #{tpu_custom_call.1} parent=0
    _
  %s7 = ssub.s32 1, %s5
  %s8 = scalar_select 0, %s7, %s5
  $region1: #{tpu_custom_call.1} parent=0
    #allocation2 [shape = 'u8[4096]{0}', space=vmem, size = 0x1000, scoped, tag = 'input window, operand 0, single buffered']
    #allocation3 [shape = 's32[1]{0}', space=sflag, size = 0x4, scoped, tag = 'scoped memory for tpu_custom_call.1']
    #allocation4 [shape = 's32[1]{0}', space=sflag, size = 0x4, scoped, tag = 'scoped memory for tpu_custom_call.1']
    #allocation5 [shape = 'u8[4096]{0}', space=vmem, size = 0x1000, scoped, tag = 'input window, operand 1, single buffered']
    #allocation6 [shape = 's32[1]{0}', space=sflag, size = 0x4, scoped, tag = 'scoped memory for tpu_custom_call.1']
    #allocation7 [shape = 'u8[65536]{0}', space=vmem, size = 0x10000, scoped, tag = 'input window, operand 2, single buffered']
    #allocation8 [shape = 'u8[4096]{0}', space=vmem, size = 0x1000, scoped, tag = 'input window, operand 3, single buffered']
    #allocation9 [shape = 's32[1]{0}', space=sflag, size = 0x4, scoped, tag = 'scoped memory for tpu_custom_call.1']
    #allocation10 [shape = 'u8[4096]{0}', space=vmem, size = 0x1000, scoped, tag = 'output window, operand 0, single buffered']
    %9 = vsyncpa [#allocation3], 0
    %10 = vsyncpa [#allocation6], 0
    %11 = vsyncpa [#allocation9], 0
    %12 = vsyncpa [#allocation4], 0
    // Predicated region
    $region2: #{tpu_custom_call.1} parent=1 // pred_check
      _
    $region3: #{tpu_custom_call.1} parent=1 // pred_check_branch
      %14 = sbr.rel (0) target = $region5
    $region4: #{tpu_custom_call.1} parent=1 // pred_region
      %s16 = ssub.s32 128, 128
      %17 = vsyncadd [#allocation3], %s16
      %s19 = sshll.u32 [#allocation2], 4
      %s20 = int_to_ptr.vmem [resolvable:$true] %s19
      %22 = dma.hbm_to_vmem [thread:$0]  %s0, 128, %s20, [#allocation3]
    $region5: #{tpu_custom_call.1} parent=1 // pred_fallthru
      _
    // Predicated region
    $region6: #{tpu_custom_call.1} parent=1 // pred_check
      _
    $region7: #{tpu_custom_call.1} parent=1 // pred_check_branch
      %24 = sbr.rel (0) target = $region9
    $region8: #{tpu_custom_call.1} parent=1 // pred_region
      %s26 = ssub.s32 128, 128
      %27 = vsyncadd [#allocation6], %s26
      %s28 = sshll.u32 [#allocation5], 4
      %s29 = int_to_ptr.vmem [resolvable:$true] %s28
      %34 = dma.hbm_to_vmem [thread:$0]  %s1, 128, %s29, [#allocation6], 64, 64, 4
    $region9: #{tpu_custom_call.1} parent=1 // pred_fallthru
      _
    // Predicated region
    $region10: #{tpu_custom_call.1} parent=1 // pred_check
      _
    $region11: #{tpu_custom_call.1} parent=1 // pred_check_branch
      %36 = sbr.rel (0) target = $region13
    $region12: #{tpu_custom_call.1} parent=1 // pred_region
      %s38 = ssub.s32 2048, 2048
      %39 = vsyncadd [#allocation6], %s38
      %s40 = sshll.u32 [#allocation7], 4
      %s41 = int_to_ptr.vmem [resolvable:$true] %s40
      %46 = dma.hbm_to_vmem [thread:$0]  %s2, 2048, %s41, [#allocation6], 128, 128, 8
    $region13: #{tpu_custom_call.1} parent=1 // pred_fallthru
      _
    // Predicated region
    $region14: #{tpu_custom_call.1} parent=1 // pred_check
      _
    $region15: #{tpu_custom_call.1} parent=1 // pred_check_branch
      %48 = sbr.rel (0) target = $region17
    $region16: #{tpu_custom_call.1} parent=1 // pred_region
      %s50 = ssub.s32 128, 128
      %51 = vsyncadd [#allocation9], %s50
      %s53 = sshll.u32 [#allocation8], 4
      %s54 = int_to_ptr.vmem [resolvable:$true] %s53
      %56 = dma.hbm_to_vmem [thread:$0]  %s3, 128, %s54, [#allocation9]
    $region17: #{tpu_custom_call.1} parent=1 // pred_fallthru
      _
    // Predicated region
    $region18: #{tpu_custom_call.1} parent=1 // pred_check
      _
    $region19: #{tpu_custom_call.1} parent=1 // pred_check_branch
      %58 = sbr.rel (0) target = $region21
    $region20: #{tpu_custom_call.1} parent=1 // pred_region
      %59 = dma.done [#allocation3], 128
    $region21: #{tpu_custom_call.1} parent=1 // pred_fallthru
      _
    // Predicated region
    $region22: #{tpu_custom_call.1} parent=1 // pred_check
      _
    $region23: #{tpu_custom_call.1} parent=1 // pred_check_branch
      %61 = sbr.rel (0) target = $region25
    $region24: #{tpu_custom_call.1} parent=1 // pred_region
      %62 = dma.done [#allocation6], 128
    $region25: #{tpu_custom_call.1} parent=1 // pred_fallthru
      _
    // Predicated region
    $region26: #{tpu_custom_call.1} parent=1 // pred_check
      _
    $region27: #{tpu_custom_call.1} parent=1 // pred_check_branch
      %64 = sbr.rel (0) target = $region29
    $region28: #{tpu_custom_call.1} parent=1 // pred_region
      %65 = dma.done [#allocation6], 2048
    $region29: #{tpu_custom_call.1} parent=1 // pred_fallthru
      _
    // Predicated region
    $region30: #{tpu_custom_call.1} parent=1 // pred_check
      _
    $region31: #{tpu_custom_call.1} parent=1 // pred_check_branch
      %67 = sbr.rel (0) target = $region33
    $region32: #{tpu_custom_call.1} parent=1 // pred_region
      %68 = dma.done [#allocation9], 128
    $region33: #{tpu_custom_call.1} parent=1 // pred_fallthru
      _
    %v70 = vld [vmem:[#allocation2] sm:$0xff]
    %v71 = vpack.c.bf16 %v70, %v70
    %v72 = vld [vmem:[#allocation5] sm:$0xf]
    %v73 = vld [vmem:[#allocation5 + $0x4] sm:$0xf]
    %v74 = vld [vmem:[#allocation8] sm:$0x1]
    %v75 = vlaneseq
    %v76 = vshrl.u32 %v75, 7
    %v77 = vsub.s32 0, %v76
    %v78 = vrot.slane %v74, %v77
    %v81 = vunpack.c.l.b16 %v72
    %v82 = vunpack.c.l.b16 %v73
    %v83 = vpack.c.b16 %v82, %v81
    %vm85 = vcmask 130048
    %v87 = vsel %vm85, %v71, 0
    %89 = vmatprep.subr.bf16.mxu0 0
    %90 = vmatpush1.bf16.msra.mxu0 0
    %91 = vmatprep.subr.bf16.mxu0 0
    %92 = vmatpush1.bf16.msra.mxu0 0
    %93 = vmatprep.subr.bf16.mxu0 0
    %94 = vmatpush1.bf16.msra.mxu0 0
    %95 = vmatprep.subr.bf16.mxu0 0
    %96 = vmatpush1.bf16.msra.mxu0 0
    %97 = vmatprep.subr.bf16.mxu0 0
    %98 = vmatpush1.bf16.msra.mxu0 0
    %99 = vmatprep.subr.bf16.mxu0 0
    %100 = vmatpush1.bf16.msra.mxu0 0
    %101 = vmatprep.subr.bf16.mxu0 0
    %102 = vmatpush1.bf16.msra.mxu0 0
    %103 = vmatprep.subr.bf16.mxu0 0
    %104 = vmatpush1.bf16.msra.mxu0 %v83
    %105 = vmatprep.subr.bf16.mxu0 0
    %106 = vmatpush2.bf16.msra.mxu0 0
    %107 = vmatprep.subr.bf16.mxu0 0
    %108 = vmatpush2.bf16.msra.mxu0 0
    %109 = vmatprep.subr.bf16.mxu0 0
    %110 = vmatpush2.bf16.msra.mxu0 0
    %111 = vmatprep.subr.bf16.mxu0 0
    %112 = vmatpush2.bf16.msra.mxu0 0
    %113 = vmatprep.subr.bf16.mxu0 0
    %114 = vmatpush2.bf16.msra.mxu0 0
    %115 = vmatprep.subr.bf16.mxu0 0
    %116 = vmatpush2.bf16.msra.mxu0 0
    %117 = vmatprep.subr.bf16.mxu0 0
    %118 = vmatpush2.bf16.msra.mxu0 0
    %119 = vmatprep.subr.bf16.mxu0 0
    %120 = vmatpush2.bf16.msra.mxu0 0
    %121 = vmatprep.mubr.bf16.mxu0 0
    %122 = vmatmul.mubr.bf16.gmra.mxu0 %v87
    %v123 = vpop.f32.mrf.mxu0
    %v124 = vadd.f32 %v78, %v123
    %v125 = vpop.f32.mrf.mxu0
    %v126 = vpop.f32.mrf.mxu0
    %v127 = vpop.f32.mrf.mxu0
    %128 = vdwg.mxu0
    %v129 = vmax.f32 %v124, 0.0
    %v130 = vpack.c.bf16 %v129, %v129
    %v131 = vld [vmem:[#allocation7] sm:$0xf]
    %v132 = vld [vmem:[#allocation7 + $0x8] sm:$0xf]
    %v133 = vld [vmem:[#allocation7 + $0x10] sm:$0xf]
    %v134 = vld [vmem:[#allocation7 + $0x18] sm:$0xf]
    %v135 = vld [vmem:[#allocation7 + $0x20] sm:$0xf]
    %v136 = vld [vmem:[#allocation7 + $0x28] sm:$0xf]
    %v137 = vld [vmem:[#allocation7 + $0x30] sm:$0xf]
    %v138 = vld [vmem:[#allocation7 + $0x38] sm:$0xf]
    %v139 = vld [vmem:[#allocation7 + $0x40] sm:$0xf]
    %v140 = vld [vmem:[#allocation7 + $0x48] sm:$0xf]
    %v141 = vld [vmem:[#allocation7 + $0x50] sm:$0xf]
    %v142 = vld [vmem:[#allocation7 + $0x58] sm:$0xf]
    %v143 = vld [vmem:[#allocation7 + $0x60] sm:$0xf]
    %v144 = vld [vmem:[#allocation7 + $0x68] sm:$0xf]
    %v145 = vld [vmem:[#allocation7 + $0x70] sm:$0xf]
    %v146 = vld [vmem:[#allocation7 + $0x78] sm:$0xf]
    %v147 = vld [vmem:[#allocation8 + $0x1] sm:$0x1]
    %v148 = vlaneseq
    %v149 = vshrl.u32 %v148, 7
    %v150 = vsub.s32 0, %v149
    %v151 = vrot.slane %v147, %v150
    %v168 = vunpack.c.l.b16 %v131
    %v169 = vunpack.c.l.b16 %v132
    %v170 = vunpack.c.l.b16 %v133
    %v171 = vunpack.c.l.b16 %v134
    %v172 = vunpack.c.l.b16 %v135
    %v173 = vunpack.c.l.b16 %v136
    %v174 = vunpack.c.l.b16 %v137
    %v175 = vunpack.c.l.b16 %v138
    %v176 = vunpack.c.l.b16 %v139
    %v177 = vunpack.c.l.b16 %v140
    %v178 = vunpack.c.l.b16 %v141
    %v179 = vunpack.c.l.b16 %v142
    %v180 = vunpack.c.l.b16 %v143
    %v181 = vunpack.c.l.b16 %v144
    %v182 = vunpack.c.l.b16 %v145
    %v183 = vunpack.c.l.b16 %v146
    %v184 = vpack.c.b16 %v169, %v168
    %v185 = vpack.c.b16 %v171, %v170
    %v186 = vpack.c.b16 %v173, %v172
    %v187 = vpack.c.b16 %v175, %v174
    %v188 = vpack.c.b16 %v177, %v176
    %v189 = vpack.c.b16 %v179, %v178
    %v190 = vpack.c.b16 %v181, %v180
    %v191 = vpack.c.b16 %v183, %v182
    %200 = vmatprep.subr.bf16.mxu0 0
    %201 = vmatpush1.bf16.msra.mxu0 %v191
    %202 = vmatprep.subr.bf16.mxu0 0
    %203 = vmatpush1.bf16.msra.mxu0 %v190
    %204 = vmatprep.subr.bf16.mxu0 0
    %205 = vmatpush1.bf16.msra.mxu0 %v189
    %206 = vmatprep.subr.bf16.mxu0 0
    %207 = vmatpush1.bf16.msra.mxu0 %v188
    %208 = vmatprep.subr.bf16.mxu0 0
    %209 = vmatpush1.bf16.msra.mxu0 %v187
    %210 = vmatprep.subr.bf16.mxu0 0
    %211 = vmatpush1.bf16.msra.mxu0 %v186
    %212 = vmatprep.subr.bf16.mxu0 0
    %213 = vmatpush1.bf16.msra.mxu0 %v185
    %214 = vmatprep.subr.bf16.mxu0 0
    %215 = vmatpush1.bf16.msra.mxu0 %v184
    %216 = vmatprep.subr.bf16.mxu0 0
    %217 = vmatpush2.bf16.msra.mxu0 0
    %218 = vmatprep.subr.bf16.mxu0 0
    %219 = vmatpush2.bf16.msra.mxu0 0
    %220 = vmatprep.subr.bf16.mxu0 0
    %221 = vmatpush2.bf16.msra.mxu0 0
    %222 = vmatprep.subr.bf16.mxu0 0
    %223 = vmatpush2.bf16.msra.mxu0 0
    %224 = vmatprep.subr.bf16.mxu0 0
    %225 = vmatpush2.bf16.msra.mxu0 0
    %226 = vmatprep.subr.bf16.mxu0 0
    %227 = vmatpush2.bf16.msra.mxu0 0
    %228 = vmatprep.subr.bf16.mxu0 0
    %229 = vmatpush2.bf16.msra.mxu0 0
    %230 = vmatprep.subr.bf16.mxu0 0
    %231 = vmatpush2.bf16.msra.mxu0 0
    %232 = vmatprep.mubr.bf16.mxu0 0
    %233 = vmatmul.mubr.bf16.gmra.mxu0 %v130
    %v234 = vpop.f32.mrf.mxu0
    %v235 = vadd.f32 %v151, %v234
    %v236 = vpop.f32.mrf.mxu0
    %v237 = vpop.f32.mrf.mxu0
    %v238 = vpop.f32.mrf.mxu0
    %239 = vdwg.mxu0
    %v240 = vmax.f32 %v235, 0.0
    %v241 = vpack.c.bf16 %v240, %v240
    %v242 = vld [vmem:[#allocation7 + $0x4] sm:$0xf]
    %v243 = vld [vmem:[#allocation7 + $0xc] sm:$0xf]
    %v244 = vld [vmem:[#allocation7 + $0x14] sm:$0xf]
    %v245 = vld [vmem:[#allocation7 + $0x1c] sm:$0xf]
    %v246 = vld [vmem:[#allocation7 + $0x24] sm:$0xf]
    %v247 = vld [vmem:[#allocation7 + $0x2c] sm:$0xf]
    %v248 = vld [vmem:[#allocation7 + $0x34] sm:$0xf]
    %v249 = vld [vmem:[#allocation7 + $0x3c] sm:$0xf]
    %v250 = vld [vmem:[#allocation7 + $0x44] sm:$0xf]
    %v251 = vld [vmem:[#allocation7 + $0x4c] sm:$0xf]
    %v252 = vld [vmem:[#allocation7 + $0x54] sm:$0xf]
    %v253 = vld [vmem:[#allocation7 + $0x5c] sm:$0xf]
    %v254 = vld [vmem:[#allocation7 + $0x64] sm:$0xf]
    %v255 = vld [vmem:[#allocation7 + $0x6c] sm:$0xf]
    %v256 = vld [vmem:[#allocation7 + $0x74] sm:$0xf]
    %v257 = vld [vmem:[#allocation7 + $0x7c] sm:$0xf]
    %v258 = vld [vmem:[#allocation8 + $0x2] sm:$0x1]
    %v259 = vlaneseq
    %v260 = vshrl.u32 %v259, 7
    %v261 = vsub.s32 0, %v260
    %v262 = vrot.slane %v258, %v261
    %v279 = vunpack.c.l.b16 %v242
    %v280 = vunpack.c.l.b16 %v243
    %v281 = vunpack.c.l.b16 %v244
    %v282 = vunpack.c.l.b16 %v245
    %v283 = vunpack.c.l.b16 %v246
    %v284 = vunpack.c.l.b16 %v247
    %v285 = vunpack.c.l.b16 %v248
    %v286 = vunpack.c.l.b16 %v249
    %v287 = vunpack.c.l.b16 %v250
    %v288 = vunpack.c.l.b16 %v251
    %v289 = vunpack.c.l.b16 %v252
    %v290 = vunpack.c.l.b16 %v253
    %v291 = vunpack.c.l.b16 %v254
    %v292 = vunpack.c.l.b16 %v255
    %v293 = vunpack.c.l.b16 %v256
    %v294 = vunpack.c.l.b16 %v257
    %v295 = vpack.c.b16 %v280, %v279
    %v296 = vpack.c.b16 %v282, %v281
    %v297 = vpack.c.b16 %v284, %v283
    %v298 = vpack.c.b16 %v286, %v285
    %v299 = vpack.c.b16 %v288, %v287
    %v300 = vpack.c.b16 %v290, %v289
    %v301 = vpack.c.b16 %v292, %v291
    %v302 = vpack.c.b16 %v294, %v293
    %311 = vmatprep.subr.bf16.mxu0 0
    %312 = vmatpush1.bf16.msra.mxu0 %v302
    %313 = vmatprep.subr.bf16.mxu0 0
    %314 = vmatpush1.bf16.msra.mxu0 %v301
    %315 = vmatprep.subr.bf16.mxu0 0
    %316 = vmatpush1.bf16.msra.mxu0 %v300
    %317 = vmatprep.subr.bf16.mxu0 0
    %318 = vmatpush1.bf16.msra.mxu0 %v299
    %319 = vmatprep.subr.bf16.mxu0 0
    %320 = vmatpush1.bf16.msra.mxu0 %v298
    %321 = vmatprep.subr.bf16.mxu0 0
    %322 = vmatpush1.bf16.msra.mxu0 %v297
    %323 = vmatprep.subr.bf16.mxu0 0
    %324 = vmatpush1.bf16.msra.mxu0 %v296
    %325 = vmatprep.subr.bf16.mxu0 0
    %326 = vmatpush1.bf16.msra.mxu0 %v295
    %327 = vmatprep.subr.bf16.mxu0 0
    %328 = vmatpush2.bf16.msra.mxu0 0
    %329 = vmatprep.subr.bf16.mxu0 0
    %330 = vmatpush2.bf16.msra.mxu0 0
    %331 = vmatprep.subr.bf16.mxu0 0
    %332 = vmatpush2.bf16.msra.mxu0 0
    %333 = vmatprep.subr.bf16.mxu0 0
    %334 = vmatpush2.bf16.msra.mxu0 0
    %335 = vmatprep.subr.bf16.mxu0 0
    %336 = vmatpush2.bf16.msra.mxu0 0
    %337 = vmatprep.subr.bf16.mxu0 0
    %338 = vmatpush2.bf16.msra.mxu0 0
    %339 = vmatprep.subr.bf16.mxu0 0
    %340 = vmatpush2.bf16.msra.mxu0 0
    %341 = vmatprep.subr.bf16.mxu0 0
    %342 = vmatpush2.bf16.msra.mxu0 0
    %343 = vmatprep.mubr.bf16.mxu0 0
    %344 = vmatmul.mubr.bf16.gmra.mxu0 %v241
    %v345 = vpop.f32.mrf.mxu0
    %v346 = vadd.f32 %v262, %v345
    %v347 = vpop.f32.mrf.mxu0
    %v348 = vpop.f32.mrf.mxu0
    %v349 = vpop.f32.mrf.mxu0
    %350 = vdwg.mxu0
    %v351 = vlaneseq
    %v352 = vand.u32 %v351, 127
    %v353 = vxor.u32 %v346, 2147483648
    %v354 = vmul.f32 %v353, 1.442695
    %v355 = vpow.pop %v354
    %v356 = vadd.f32 %v355, 1.0
    %v357 = vrcp.pop %v356
    %v358 = vmul.f32 1.0, %v357
    %v359 = vtanh.pop %v346
    %v360 = vmul.f32 %v359, 6.0
    %v361 = vadd.f32 %v360, -10.0
    %v362 = vmul.f32 %v361, 1.442695
    %v363 = vpow.pop %v362
    %vm364 = vcmp.lt.s32.totalorder %v352, 2
    %vm365 = vcmp.lt.s32.totalorder %v352, 4
    %v366 = vsel %vm365, %v346, %v363
    %v367 = vsel %vm364, %v358, %v366
    %vm368 = vcmp.lt.s32.totalorder %v352, 6
    %v369 = vsel %vm368, %v367, 0.0
    %370 = vst [vmem:[#allocation10] sm:$0xff] %v369
    // Predicated region
    $region34: #{tpu_custom_call.1} parent=1 // pred_check
      _
    $region35: #{tpu_custom_call.1} parent=1 // pred_check_branch
      %372 = sbr.rel (0) target = $region37
    $region36: #{tpu_custom_call.1} parent=1 // pred_region
      %s374 = ssub.s32 128, 128
      %375 = vsyncadd [#allocation4], %s374
      %s377 = sshll.u32 [#allocation10], 4
      %s378 = int_to_ptr.vmem [resolvable:$true] %s377
      %380 = dma.vmem_to_hbm [thread:$0]  %s378, 128, %s4, [#allocation4]
    $region37: #{tpu_custom_call.1} parent=1 // pred_fallthru
      _
    // Predicated region
    $region38: #{tpu_custom_call.1} parent=1 // pred_check
      _
    $region39: #{tpu_custom_call.1} parent=1 // pred_check_branch
      %382 = sbr.rel (0) target = $region41
    $region40: #{tpu_custom_call.1} parent=1 // pred_region
      %383 = dma.done [#allocation4], 128
    $region41: #{tpu_custom_call.1} parent=1 // pred_fallthru
      _
    %384 = vsyncpa [#allocation3], 1
    %385 = vsyncpa [#allocation6], 1
    %386 = vsyncpa [#allocation9], 1
    %387 = vsyncpa [#allocation4], 1

</llo_original>
